<compile_context>
chip_gen: v5e
topology: v5e:2x2
jax: 0.10.0
libtpu: 0.0.40
codegen_flags: <defaults>
</compile_context>

<pallas_src>
import math

import jax
import jax.numpy as jnp
from jax import lax
from jax.experimental import pallas as pl
from jax.experimental.pallas import tpu as pltpu

_LANE = 128


def _round_up(x, m):
    return ((x + m - 1) // m) * m


def _pad_to(a, shape):
    pads = tuple((0, t - s) for s, t in zip(a.shape, shape))
    return jnp.pad(a, pads)


_VMEM_LIMIT = None


def _vmem_limit_bytes():
    """Per-generation VMEM budget (v7x only has 64 MiB physical VMEM)."""
    global _VMEM_LIMIT
    if _VMEM_LIMIT is None:
        try:
            cap = int(pltpu.get_tpu_info().vmem_capacity_bytes)
        except Exception:
            cap = 64 * 1024 * 1024
        _VMEM_LIMIT = max(32 * 1024 * 1024,
                          min((cap * 3) // 4, 100 * 1024 * 1024))
    return _VMEM_LIMIT


# --------------------------- BN statistics kernel ---------------------------
# Only used for the external NetworkBlock input; every later BN's statistics
# are produced fused inside the preceding conv kernel.

def bn_stats(x2d):
    """Per-channel (mean, biased var) over the M axis of an (M, C) array."""
    M, C = x2d.shape
    tm = min(1024, _round_up(M, 8))
    grid_m = pl.cdiv(M, tm)

    def kernel(x_ref, o_ref):
        @pl.when(pl.program_id(0) == 0)
        def _init():
            o_ref[...] = jnp.zeros_like(o_ref)

        x = x_ref[...].astype(jnp.float32)
        rows = lax.broadcasted_iota(jnp.int32, x.shape, 0) + pl.program_id(0) * tm
        x = jnp.where(rows < M, x, 0.0)          # mask remainder rows
        s0 = jnp.sum(x, axis=0, keepdims=True)
        s1 = jnp.sum(x * x, axis=0, keepdims=True)
        o_ref[...] += jnp.concatenate([s0, s1], axis=0)   # single accumulate

    stats = pl.pallas_call(
        kernel,
        out_shape=jax.ShapeDtypeStruct((2, C), jnp.float32),
        grid=(grid_m,),
        in_specs=[pl.BlockSpec((tm, C), lambda i: (i, 0))],
        out_specs=pl.BlockSpec((2, C), lambda i: (0, 0)),
        compiler_params=pltpu.CompilerParams(
            dimension_semantics=("arbitrary",),
            vmem_limit_bytes=_vmem_limit_bytes()),
        cost_estimate=pl.CostEstimate(
            flops=3 * int(M) * int(C), transcendentals=0,
            bytes_accessed=int(M) * int(C) * x2d.dtype.itemsize + 2 * int(C) * 4),
    )(x2d)
    mean = stats[0] / M
    # TODO(synk): E[x^2]-E[x]^2 can cancel for large M; a Welford/two-pass
    # reduction would be more robust if stats accuracy ever matters here.
    var = jnp.maximum(stats[1] / M - mean * mean, 0.0)
    return mean, var


# ------------- fused BN+ReLU+conv3x3 (+1x1 shortcut / +residual) ------------

def _make_conv_kernel(stride, nb, ho, wo, h_in, w_in, has_shortcut, has_residual):
    s = stride
    m = nb * ho * wo

    def kernel(*refs):
        x_ref, sc_ref, sh_ref, w_ref = refs[:4]
        i = 4
        ws_ref = res_ref = None
        if has_shortcut:
            ws_ref = refs[i]; i += 1
        if has_residual:
            res_ref = refs[i]; i += 1
        out_ref, stats_ref = refs[i], refs[i + 1]; i += 2
        short_ref = refs[i] if has_shortcut else None
        a_scr = refs[-1]

        cin = x_ref.shape[-1]
        tn = out_ref.shape[-1]

        # ---- normalize ONCE per grid step: BN affine + ReLU + halo mask ----
        xv = x_ref[...].astype(jnp.float32)                 # (nb, s2, Hs, Ws, cin)
        scale = sc_ref[...].reshape(1, 1, 1, 1, cin)
        shift = sh_ref[...].reshape(1, 1, 1, 1, cin)
        a = jnp.maximum(xv * scale + shift, 0.0)
        # Zero the spatial padding AFTER BN+ReLU (PyTorch zero-pads the
        # post-activation tensor inside the conv).
        shp = a.shape
        p_i = lax.broadcasted_iota(jnp.int32, shp, 1)       # phase index
        u_i = lax.broadcasted_iota(jnp.int32, shp, 2)       # phase row
        v_i = lax.broadcasted_iota(jnp.int32, shp, 3)       # phase col
        r = (p_i // s) + u_i * s                            # padded-coord row
        c = (p_i % s) + v_i * s                             # padded-coord col
        valid = (r >= 1) & (r <= h_in) & (c >= 1) & (c <= w_in)
        a_scr[...] = jnp.where(valid, a, 0.0).astype(jnp.bfloat16)

        # ---- 9-tap conv: uninterrupted MXU accumulation (f32 accumulator) ----
        acc = jnp.zeros((m, tn), jnp.float32)
        for kh in range(3):
            for kw in range(3):
                ph = (kh % s) * s + (kw % s)
                r0, c0 = kh // s, kw // s
                win = a_scr[:, ph, pl.ds(r0, ho), pl.ds(c0, wo), :]
                acc = acc + jnp.dot(win.reshape(m, cin), w_ref[kh, kw],
                                    preferred_element_type=jnp.float32)

        # ---- fused strided 1x1 shortcut on the normalized center tap ----
        if has_shortcut:
            pc = (1 % s) * s + (1 % s)
            rc = 1 // s
            a_c = a_scr[:, pc, pl.ds(rc, ho), pl.ds(rc, wo), :]
            sc_out = jnp.dot(a_c.reshape(m, cin), ws_ref[...],
                             preferred_element_type=jnp.float32)
            short_ref[...] = sc_out.reshape(nb, ho, wo, tn).astype(short_ref.dtype)

        if has_residual:
            acc = acc + res_ref[...].astype(jnp.float32).reshape(m, tn)

        out_ref[...] = acc.reshape(nb, ho, wo, tn).astype(out_ref.dtype)

        # ---- fused per-channel partial BN stats of the output (next BN) ----
        s0 = jnp.sum(acc, axis=0, keepdims=True)
        s1 = jnp.sum(acc * acc, axis=0, keepdims=True)
        stats_ref[...] = jnp.concatenate([s0, s1], axis=0).reshape(1, 2, tn)

    return kernel


def fused_conv3x3(x, scale, shift, w, shortcut_w=None, residual=None, stride=1):
    """y = conv3x3_stride( relu(x*scale + shift) ) [+ residual].

    Returns (y, (mean, var) of y) and, if `shortcut_w` is given, also
    conv1x1_stride( relu(x*scale + shift) ).  Activations are bf16 in HBM,
    accumulation/statistics are f32.
    """
    assert not (shortcut_w is not None and residual is not None)
    N, H, W, Cin = x.shape
    Cout = w.shape[-1]
    assert Cin % _LANE == 0 and Cout % _LANE == 0
    # TN=256 feeds the full 256-wide MXU on v6e/v7x; otherwise 128 (v5e).
    TN = 256 if Cout % 256 == 0 else 128
    n_ct = Cout // TN

    Ho = (H - 1) // stride + 1
    Wo = (W - 1) // stride + 1
    s2 = stride * stride

    # spatial zero-pad (halo re-zeroed post-BN in-kernel) + phase decomposition
    xp = jnp.pad(x, ((0, 0), (1, 1), (1, 1), (0, 0)))
    if stride == 1:
        xph = xp[:, None]                                      # (N,1,H+2,W+2,Cin)
        Hs, Ws = H + 2, W + 2
    else:
        # TODO(synk): the phase stack is still materialized in HBM for strided
        # layers; in-kernel strided pl.ds reads would remove this round trip.
        Hp = _round_up(H + 2, stride)
        Wp = _round_up(W + 2, stride)
        xp = jnp.pad(xp, ((0, 0), (0, Hp - (H + 2)), (0, Wp - (W + 2)), (0, 0)))
        Hs, Ws = Hp // stride, Wp // stride
        phases = [xp[:, i::stride, j::stride, :]
                  for i in range(stride) for j in range(stride)]
        xph = jnp.stack(phases, axis=1)                        # (N,s2,Hs,Ws,Cin)

    # batch packing: flatten NB images into the matmul M dimension.
    NB = 1
    for cand in range(min(N, 8), 0, -1):
        if N % cand == 0 and cand * Ho * Wo <= 512:
            NB = cand
            break
    n_bg = N // NB

    has_shortcut = shortcut_w is not None
    has_residual = residual is not None
    kernel = _make_conv_kernel(stride, NB, Ho, Wo, H, W,
                               has_shortcut, has_residual)

    # grid = (cout_tiles, batch_groups): batch innermost so the weight tile's
    # block index is constant across consecutive steps (stays VMEM-resident).
    grid = (n_ct, n_bg)

    in_specs = [
        pl.BlockSpec((NB, s2, Hs, Ws, Cin), lambda j, b: (b, 0, 0, 0, 0)),
        pl.BlockSpec((1, Cin), lambda j, b: (0, 0)),
        pl.BlockSpec((1, Cin), lambda j, b: (0, 0)),
        pl.BlockSpec((3, 3, Cin, TN), lambda j, b: (0, 0, 0, j)),
    ]
    inputs = [xph, scale, shift, w]
    if has_shortcut:
        in_specs.append(pl.BlockSpec((Cin, TN), lambda j, b: (0, j)))
        inputs.append(shortcut_w)
    if has_residual:
        in_specs.append(pl.BlockSpec((NB, Ho, Wo, TN), lambda j, b: (b, 0, 0, j)))
        inputs.append(residual)

    out_shapes = [jax.ShapeDtypeStruct((N, Ho, Wo, Cout), jnp.bfloat16),
                  jax.ShapeDtypeStruct((n_bg, 2, Cout), jnp.float32)]
    out_specs = [pl.BlockSpec((NB, Ho, Wo, TN), lambda j, b: (b, 0, 0, j)),
                 pl.BlockSpec((1, 2, TN), lambda j, b: (b, 0, j))]
    if has_shortcut:
        out_shapes.append(jax.ShapeDtypeStruct((N, Ho, Wo, Cout), jnp.bfloat16))
        out_specs.append(pl.BlockSpec((NB, Ho, Wo, TN), lambda j, b: (b, 0, 0, j)))

    m_total = N * Ho * Wo
    flops = 2 * m_total * 9 * Cin * Cout
    if has_shortcut:
        flops += 2 * m_total * Cin * Cout
    bytes_accessed = int(xph.size) * xph.dtype.itemsize * n_ct + int(w.size) * 2
    bytes_accessed += m_total * Cout * 2 * (2 if has_shortcut else 1)
    if has_residual:
        bytes_accessed += int(residual.size) * residual.dtype.itemsize
    bytes_accessed += n_bg * 2 * Cout * 4 + 2 * Cin * 4

    results = pl.pallas_call(
        kernel,
        out_shape=tuple(out_shapes),
        grid=grid,
        in_specs=in_specs,
        out_specs=tuple(out_specs),
        scratch_shapes=[pltpu.VMEM((NB, s2, Hs, Ws, Cin), jnp.bfloat16)],
        compiler_params=pltpu.CompilerParams(
            dimension_semantics=("parallel", "parallel"),
            vmem_limit_bytes=_vmem_limit_bytes()),
        cost_estimate=pl.CostEstimate(flops=int(flops), transcendentals=0,
                                      bytes_accessed=int(bytes_accessed)),
    )(*inputs)

    out = results[0]
    stats = results[1].sum(axis=0)                         # (2, Cout)
    mean = stats[0] / m_total
    var = jnp.maximum(stats[1] / m_total - mean * mean, 0.0)
    if has_shortcut:
        return out, (mean, var), results[2]
    return out, (mean, var)


# ------------------------------ BasicBlock ----------------------------------

def init_basic_block(key, in_planes, out_planes, stride):
    cin_p = _round_up(in_planes, _LANE)
    cout_p = _round_up(out_planes, _LANE)
    k1, k2, k3 = jax.random.split(key, 3)
    w1 = jax.random.normal(k1, (3, 3, in_planes, out_planes),
                           jnp.float32) * math.sqrt(2.0 / (9 * out_planes))
    w2 = jax.random.normal(k2, (3, 3, out_planes, out_planes),
                           jnp.float32) * math.sqrt(2.0 / (9 * out_planes))
    p = {
        "stride": stride,
        "equal_in_out": (in_planes == out_planes) and (stride == 1),
        "cin_p": cin_p,
        "cout_p": cout_p,
        "out_planes": out_planes,
        # lane-padded bf16 weights for the MXU; padded columns are 0
        "conv1_w": _pad_to(w1, (3, 3, cin_p, cout_p)).astype(jnp.bfloat16),
        "conv2_w": _pad_to(w2, (3, 3, cout_p, cout_p)).astype(jnp.bfloat16),
        # padded gamma entries are 0, beta 0 -> padded lanes stay exactly 0
        "bn1_gamma": _pad_to(jnp.ones((in_planes,), jnp.float32), (cin_p,)),
        "bn1_beta": jnp.zeros((cin_p,), jnp.float32),
        "bn2_gamma": _pad_to(jnp.ones((out_planes,), jnp.float32), (cout_p,)),
        "bn2_beta": jnp.zeros((cout_p,), jnp.float32),
    }
    if not p["equal_in_out"]:
        ws = jax.random.normal(k3, (in_planes, out_planes),
                               jnp.float32) * math.sqrt(2.0 / out_planes)
        p["short_w"] = _pad_to(ws, (cin_p, cout_p)).astype(jnp.bfloat16)
    return p


def basic_block_forward(x, in_mean, in_var, p):
    """x: NHWC bf16, channels padded to p['cin_p']; (in_mean, in_var) are the
    batch statistics of x (= bn1's statistics, produced by the previous conv
    kernel's fused epilogue or, for the first layer, by bn_stats)."""
    eps = 1e-5
    stride = p["stride"]

    scale1 = (p["bn1_gamma"] * lax.rsqrt(in_var + eps)).reshape(1, -1)
    shift1 = (p["bn1_beta"] - in_mean * scale1[0]).reshape(1, -1)

    if p["equal_in_out"]:
        c1, (m2, v2) = fused_conv3x3(x, scale1, shift1, p["conv1_w"],
                                     stride=stride)
        residual = x                      # identity shortcut on the raw input
    else:
        # conv1 + fused strided 1x1 shortcut on relu(bn1(x)) in one kernel
        c1, (m2, v2), residual = fused_conv3x3(
            x, scale1, shift1, p["conv1_w"], shortcut_w=p["short_w"],
            stride=stride)

    scale2 = (p["bn2_gamma"] * lax.rsqrt(v2 + eps)).reshape(1, -1)
    shift2 = (p["bn2_beta"] - m2 * scale2[0]).reshape(1, -1)

    # TODO(synk): dropout between relu(bn2) and conv2 omitted (dropRate=0.0).
    out, (m_next, v_next) = fused_conv3x3(c1, scale2, shift2, p["conv2_w"],
                                          residual=residual, stride=1)
    return out, m_next, v_next


# ------------------------------ NetworkBlock --------------------------------

def init_network_block(key, nb_layers, in_planes, out_planes, stride):
    keys = jax.random.split(key, nb_layers)
    params = []
    for i in range(nb_layers):
        ip = in_planes if i == 0 else out_planes
        s = stride if i == 0 else 1
        params.append(init_basic_block(keys[i], ip, out_planes, s))
    return params


def network_block_forward(x_nchw, params):
    out_planes = params[-1]["out_planes"]
    cin_p = params[0]["cin_p"]
    # single NCHW -> NHWC transpose, channel pad and bf16 cast at the boundary
    x = jnp.transpose(x_nchw, (0, 2, 3, 1)).astype(jnp.float32)
    x = jnp.pad(x, ((0, 0), (0, 0), (0, 0), (0, cin_p - x.shape[-1])))
    x = x.astype(jnp.bfloat16)
    # bn1 stats of the external input; all later BN stats come fused out of
    # the previous conv kernel's epilogue.
    mean, var = bn_stats(x.reshape(-1, cin_p))
    for p in params:
        x, mean, var = basic_block_forward(x, mean, var, p)
    x = x[..., :out_planes].astype(jnp.float32)   # drop lane padding once
    return jnp.transpose(x, (0, 3, 1, 2))


# --------------------------------- main --------------------------------------

if __name__ == "__main__":
    key = jax.random.PRNGKey(0)
    kx, kp = jax.random.split(key)

    # NetworkBlock(nb_layers=2, in_planes=4, out_planes=8, block=BasicBlock, stride=2)
    N, C, H, W = 2, 4, 16, 16
    nb_layers, in_planes, out_planes, stride = 2, 4, 8, 2

    x = jax.random.normal(kx, (N, C, H, W), dtype=jnp.float32)
    params = init_network_block(kp, nb_layers, in_planes, out_planes, stride)

    y = network_block_forward(x, params)
    y = jax.block_until_ready(y)

    expected_shape = (N, out_planes, H // stride, W // stride)
    assert y.shape == expected_shape, (y.shape, expected_shape)
    assert bool(jnp.all(jnp.isfinite(y)))
    print("KERNEL_OK")
</pallas_src>

<mosaic_0001>
module attributes {stable_mosaic.version = 11 : i64} {
  func.func @kernel(%arg0: i32, %arg1: memref<512x128xbf16, #tpu.memory_space<vmem>>, %arg2: memref<2x128xf32, #tpu.memory_space<vmem>>) attributes {dimension_semantics = [#tpu.dimension_semantics<arbitrary>], iteration_bounds = array<i64: 1>, scalar_prefetch = 0 : i64, scratch_operands = 0 : i64, tpu.core_type = #tpu.core_type<tc>, window_params = [{transform_indices = @transform_0, window_bounds = array<i64: 512, 128>}, {pipeline_mode = #tpu.pipeline_mode<synchronous>, transform_indices = @transform_1, window_bounds = array<i64: 2, 128>}]} {
    %c0_i32 = arith.constant 0 : i32
    %0 = arith.cmpi eq, %arg0, %c0_i32 : i32
    %1 = arith.extui %0 : i1 to i32
    %c0_i32_0 = arith.constant 0 : i32
    %2 = arith.cmpi ne, %1, %c0_i32_0 : i32
    scf.if %2 {
      %cst_9 = arith.constant 0.000000e+00 : f32
      %22 = vector.broadcast %cst_9 : f32 to vector<2x128xf32>
      %c0_10 = arith.constant 0 : index
      %c0_11 = arith.constant 0 : index
      %23 = vector.load %arg2[%c0_10, %c0_11] : memref<2x128xf32, #tpu.memory_space<vmem>>, vector<2x128xf32>
      tpu.vector_store %arg2[%c0_10, %c0_11], %22 {strides = array<i32>} : memref<2x128xf32, #tpu.memory_space<vmem>>, vector<2x128xf32>,
    } else {
    }
    %c0 = arith.constant 0 : index
    %c0_1 = arith.constant 0 : index
    %3 = vector.load %arg1[%c0, %c0_1] : memref<512x128xbf16, #tpu.memory_space<vmem>>, vector<512x128xbf16>
    %4 = arith.extf %3 : vector<512x128xbf16> to vector<512x128xf32>
    %5 = tpu.iota {dimensions = array<i32: 0>} : vector<512x128xi32>
    %c512_i32 = arith.constant 512 : i32
    %6 = arith.muli %arg0, %c512_i32 : i32
    %7 = vector.broadcast %6 : i32 to vector<512x128xi32>
    %8 = arith.addi %5, %7 : vector<512x128xi32>
    %c512_i32_2 = arith.constant 512 : i32
    %9 = vector.broadcast %c512_i32_2 : i32 to vector<512x128xi32>
    %10 = arith.cmpi slt, %8, %9 : vector<512x128xi32>
    %cst = arith.constant 0.000000e+00 : f32
    %11 = vector.broadcast %cst : f32 to vector<512x128xf32>
    %12 = arith.select %10, %4, %11 : vector<512x128xi1>, vector<512x128xf32>
    %cst_3 = arith.constant dense<0.000000e+00> : vector<128xf32>
    %13 = vector.multi_reduction <add>, %12, %cst_3 [0] : vector<512x128xf32> to vector<128xf32>
    %14 = vector.shape_cast %13 : vector<128xf32> to vector<1x128xf32>
    %15 = arith.mulf %12, %12 : vector<512x128xf32>
    %cst_4 = arith.constant dense<0.000000e+00> : vector<128xf32>
    %16 = vector.multi_reduction <add>, %15, %cst_4 [0] : vector<512x128xf32> to vector<128xf32>
    %17 = vector.shape_cast %16 : vector<128xf32> to vector<1x128xf32>
    %c0_5 = arith.constant 0 : index
    %c0_6 = arith.constant 0 : index
    %18 = vector.load %arg2[%c0_5, %c0_6] : memref<2x128xf32, #tpu.memory_space<vmem>>, vector<2x128xf32>
    %19 = tpu.concatenate %14, %17 in 0 : vector<1x128xf32>, vector<1x128xf32> -> vector<2x128xf32>
    %20 = arith.addf %18, %19 : vector<2x128xf32>
    %c0_7 = arith.constant 0 : index
    %c0_8 = arith.constant 0 : index
    %21 = vector.load %arg2[%c0_7, %c0_8] : memref<2x128xf32, #tpu.memory_space<vmem>>, vector<2x128xf32>
    tpu.vector_store %arg2[%c0_7, %c0_8], %20 {strides = array<i32>} : memref<2x128xf32, #tpu.memory_space<vmem>>, vector<2x128xf32>,
    return
  }
  func.func @transform_0(%arg0: i32) -> (i32, i32) {
    %c0_i32 = arith.constant 0 : i32
    %c0_i32_0 = arith.constant 0 : i32
    return %arg0, %c0_i32 : i32, i32
  }
  func.func @transform_1(%arg0: i32) -> (i32, i32) {
    %c0_i32 = arith.constant 0 : i32
    %c0_i32_0 = arith.constant 0 : i32
    %c0_i32_1 = arith.constant 0 : i32
    return %c0_i32, %c0_i32_0 : i32, i32
  }
}

</mosaic_0001>

<llo_original>
// kernel: tpu_custom_call.1
$region0: #{tpu_custom_call.1}
  #allocation0 [shape = 'u32[]', space=smem, size = 0x4, offset = 0x4, fixed_abs, tag = 'smem constant byte address 0x4 - core index']
  #allocation1 [shape = 'u32[72,128]{1,0:T(1,128)}', space=vmem, size = 0x9000, scoped, tag = 'internal scratch']
  %s0 = inlined_call_operand.hbm [shape: bf16[512,128], index: 0, kind: input, shape index: {}]
  %s1 = inlined_call_operand.hbm [shape: f32[2,128], index: 1, kind: output, shape index: {}]
  %s2 = sld [smem:[#allocation0]]
  $region22: #{tpu_custom_call.1} parent=0
    _
  %s4 = ssub.s32 1, %s2
  %s5 = scalar_select 0, %s4, %s2
  $region1: #{tpu_custom_call.1} parent=0
    #allocation2 [shape = 'u8[131072]{0}', space=vmem, size = 0x20000, scoped, tag = 'input window, operand 0, single buffered']
    #allocation3 [shape = 's32[1]{0}', space=sflag, size = 0x4, scoped, tag = 'scoped memory for tpu_custom_call.1']
    #allocation4 [shape = 's32[1]{0}', space=sflag, size = 0x4, scoped, tag = 'scoped memory for tpu_custom_call.1']
    #allocation5 [shape = 'u8[1024]{0}', space=vmem, size = 0x400, scoped, tag = 'output window, operand 0, single buffered']
    %6 = vsyncpa [#allocation3], 0
    %7 = vsyncpa [#allocation4], 0
    // Predicated region
    $region2: #{tpu_custom_call.1} parent=1 // pred_check
      _
    $region3: #{tpu_custom_call.1} parent=1 // pred_check_branch
      %9 = sbr.rel (0) target = $region5
    $region4: #{tpu_custom_call.1} parent=1 // pred_region
      %11 = vsyncadd [#allocation3], 0
      %s12 = sshll.u32 %s0, 4
      %s13 = int_to_ptr.hbm [resolvable:$true] %s12
      %s14 = sshll.u32 [#allocation2], 4
      %s15 = int_to_ptr.vmem [resolvable:$true] %s14
      %20 = dma.hbm_to_vmem [thread:$0]  %s13, 4096, %s15, [#allocation3], 64, 64, 4
    $region5: #{tpu_custom_call.1} parent=1 // pred_fallthru
      _
    // Predicated region
    $region6: #{tpu_custom_call.1} parent=1 // pred_check
      _
    $region7: #{tpu_custom_call.1} parent=1 // pred_check_branch
      %22 = sbr.rel (0) target = $region9
    $region8: #{tpu_custom_call.1} parent=1 // pred_region
      %24 = dma.done [#allocation3], 4096
    $region9: #{tpu_custom_call.1} parent=1 // pred_fallthru
      _
    %p25 = scmp.eq.s32.totalorder 0, 0
    // Predicated region
    $region10: #{tpu_custom_call.1} parent=1 // pred_check
      %p26 = pneg %p25
    $region11: #{tpu_custom_call.1} parent=1 // pred_check_branch
      %28 = sbr.rel (%p26) target = $region13
    $region12: #{tpu_custom_call.1} parent=1 // pred_region
      %29 = vst [vmem:[#allocation5] sm:$0x3] 0.0
    $region13: #{tpu_custom_call.1} parent=1 // pred_fallthru
      _
    %v30 = vld [vmem:[#allocation2] sm:$0xf]
    %v31 = vld [vmem:[#allocation2 + $0x4] sm:$0xf]
    %v32 = vld [vmem:[#allocation2 + $0x8] sm:$0xf]
    %v33 = vld [vmem:[#allocation2 + $0xc] sm:$0xf]
    %v34 = vld [vmem:[#allocation2 + $0x10] sm:$0xf]
    %v35 = vld [vmem:[#allocation2 + $0x14] sm:$0xf]
    %v36 = vld [vmem:[#allocation2 + $0x18] sm:$0xf]
    %v37 = vld [vmem:[#allocation2 + $0x1c] sm:$0xf]
    %v38 = vld [vmem:[#allocation2 + $0x20] sm:$0xf]
    %v39 = vld [vmem:[#allocation2 + $0x24] sm:$0xf]
    %v40 = vld [vmem:[#allocation2 + $0x28] sm:$0xf]
    %v41 = vld [vmem:[#allocation2 + $0x2c] sm:$0xf]
    %v42 = vld [vmem:[#allocation2 + $0x30] sm:$0xf]
    %v43 = vld [vmem:[#allocation2 + $0x34] sm:$0xf]
    %v44 = vld [vmem:[#allocation2 + $0x38] sm:$0xf]
    %v45 = vld [vmem:[#allocation2 + $0x3c] sm:$0xf]
    %v46 = vld [vmem:[#allocation2 + $0x40] sm:$0xf]
    %v47 = vld [vmem:[#allocation2 + $0x44] sm:$0xf]
    %v48 = vld [vmem:[#allocation2 + $0x48] sm:$0xf]
    %v49 = vld [vmem:[#allocation2 + $0x4c] sm:$0xf]
    %v50 = vld [vmem:[#allocation2 + $0x50] sm:$0xf]
    %v51 = vld [vmem:[#allocation2 + $0x54] sm:$0xf]
    %v52 = vld [vmem:[#allocation2 + $0x58] sm:$0xf]
    %v53 = vld [vmem:[#allocation2 + $0x5c] sm:$0xf]
    %v54 = vld [vmem:[#allocation2 + $0x60] sm:$0xf]
    %v55 = vld [vmem:[#allocation2 + $0x64] sm:$0xf]
    %v56 = vld [vmem:[#allocation2 + $0x68] sm:$0xf]
    %v57 = vld [vmem:[#allocation2 + $0x6c] sm:$0xf]
    %v58 = vld [vmem:[#allocation2 + $0x70] sm:$0xf]
    %v59 = vld [vmem:[#allocation2 + $0x74] sm:$0xf]
    %v60 = vld [vmem:[#allocation2 + $0x78] sm:$0xf]
    %v61 = vld [vmem:[#allocation2 + $0x7c] sm:$0xf]
    %v62 = vld [vmem:[#allocation2 + $0x80] sm:$0xf]
    %v63 = vld [vmem:[#allocation2 + $0x84] sm:$0xf]
    %v64 = vld [vmem:[#allocation2 + $0x88] sm:$0xf]
    %v65 = vld [vmem:[#allocation2 + $0x8c] sm:$0xf]
    %v66 = vld [vmem:[#allocation2 + $0x90] sm:$0xf]
    %v67 = vld [vmem:[#allocation2 + $0x94] sm:$0xf]
    %v68 = vld [vmem:[#allocation2 + $0x98] sm:$0xf]
    %v69 = vld [vmem:[#allocation2 + $0x9c] sm:$0xf]
    %v70 = vld [vmem:[#allocation2 + $0xa0] sm:$0xf]
    %v71 = vld [vmem:[#allocation2 + $0xa4] sm:$0xf]
    %v72 = vld [vmem:[#allocation2 + $0xa8] sm:$0xf]
    %v73 = vld [vmem:[#allocation2 + $0xac] sm:$0xf]
    %v74 = vld [vmem:[#allocation2 + $0xb0] sm:$0xf]
    %v75 = vld [vmem:[#allocation2 + $0xb4] sm:$0xf]
    %v76 = vld [vmem:[#allocation2 + $0xb8] sm:$0xf]
    %v77 = vld [vmem:[#allocation2 + $0xbc] sm:$0xf]
    %v78 = vld [vmem:[#allocation2 + $0xc0] sm:$0xf]
    %v79 = vld [vmem:[#allocation2 + $0xc4] sm:$0xf]
    %v80 = vld [vmem:[#allocation2 + $0xc8] sm:$0xf]
    %v81 = vld [vmem:[#allocation2 + $0xcc] sm:$0xf]
    %v82 = vld [vmem:[#allocation2 + $0xd0] sm:$0xf]
    %v83 = vld [vmem:[#allocation2 + $0xd4] sm:$0xf]
    %v84 = vld [vmem:[#allocation2 + $0xd8] sm:$0xf]
    %v85 = vld [vmem:[#allocation2 + $0xdc] sm:$0xf]
    %v86 = vld [vmem:[#allocation2 + $0xe0] sm:$0xf]
    %v87 = vld [vmem:[#allocation2 + $0xe4] sm:$0xf]
    %v88 = vld [vmem:[#allocation2 + $0xe8] sm:$0xf]
    %v89 = vld [vmem:[#allocation2 + $0xec] sm:$0xf]
    %v90 = vld [vmem:[#allocation2 + $0xf0] sm:$0xf]
    %v91 = vld [vmem:[#allocation2 + $0xf4] sm:$0xf]
    %v92 = vld [vmem:[#allocation2 + $0xf8] sm:$0xf]
    %v93 = vld [vmem:[#allocation2 + $0xfc] sm:$0xf]
    %v94 = vunpack.c.l.bf16 %v30
    %v95 = vunpack.c.l.bf16 %v31
    %v96 = vunpack.c.l.bf16 %v32
    %v97 = vunpack.c.l.bf16 %v33
    %v98 = vunpack.c.l.bf16 %v34
    %v99 = vunpack.c.l.bf16 %v35
    %v100 = vunpack.c.l.bf16 %v36
    %v101 = vunpack.c.l.bf16 %v37
    %v102 = vunpack.c.l.bf16 %v38
    %v103 = vunpack.c.l.bf16 %v39
    %v104 = vunpack.c.l.bf16 %v40
    %v105 = vunpack.c.l.bf16 %v41
    %v106 = vunpack.c.l.bf16 %v42
    %v107 = vunpack.c.l.bf16 %v43
    %v108 = vunpack.c.l.bf16 %v44
    %v109 = vunpack.c.l.bf16 %v45
    %v110 = vunpack.c.l.bf16 %v46
    %v111 = vunpack.c.l.bf16 %v47
    %v112 = vunpack.c.l.bf16 %v48
    %v113 = vunpack.c.l.bf16 %v49
    %v114 = vunpack.c.l.bf16 %v50
    %v115 = vunpack.c.l.bf16 %v51
    %v116 = vunpack.c.l.bf16 %v52
    %v117 = vunpack.c.l.bf16 %v53
    %v118 = vunpack.c.l.bf16 %v54
    %v119 = vunpack.c.l.bf16 %v55
    %v120 = vunpack.c.l.bf16 %v56
    %v121 = vunpack.c.l.bf16 %v57
    %v122 = vunpack.c.l.bf16 %v58
    %v123 = vunpack.c.l.bf16 %v59
    %v124 = vunpack.c.l.bf16 %v60
    %v125 = vunpack.c.l.bf16 %v61
    %v126 = vunpack.c.l.bf16 %v62
    %v127 = vunpack.c.l.bf16 %v63
    %v128 = vunpack.c.l.bf16 %v64
    %v129 = vunpack.c.l.bf16 %v65
    %v130 = vunpack.c.l.bf16 %v66
    %v131 = vunpack.c.l.bf16 %v67
    %v132 = vunpack.c.l.bf16 %v68
    %v133 = vunpack.c.l.bf16 %v69
    %v134 = vunpack.c.l.bf16 %v70
    %v135 = vunpack.c.l.bf16 %v71
    %v136 = vunpack.c.l.bf16 %v72
    %v137 = vunpack.c.l.bf16 %v73
    %v138 = vunpack.c.l.bf16 %v74
    %v139 = vunpack.c.l.bf16 %v75
    %v140 = vunpack.c.l.bf16 %v76
    %v141 = vunpack.c.l.bf16 %v77
    %v142 = vunpack.c.l.bf16 %v78
    %v143 = vunpack.c.l.bf16 %v79
    %v144 = vunpack.c.l.bf16 %v80
    %v145 = vunpack.c.l.bf16 %v81
    %v146 = vunpack.c.l.bf16 %v82
    %v147 = vunpack.c.l.bf16 %v83
    %v148 = vunpack.c.l.bf16 %v84
    %v149 = vunpack.c.l.bf16 %v85
    %v150 = vunpack.c.l.bf16 %v86
    %v151 = vunpack.c.l.bf16 %v87
    %v152 = vunpack.c.l.bf16 %v88
    %v153 = vunpack.c.l.bf16 %v89
    %v154 = vunpack.c.l.bf16 %v90
    %v155 = vunpack.c.l.bf16 %v91
    %v156 = vunpack.c.l.bf16 %v92
    %v157 = vunpack.c.l.bf16 %v93
    %v158 = vlaneseq
    %v159 = vshrl.u32 %v158, 7
    %v160 = vadd.s32 %v159, 8
    %v161 = vadd.s32 %v159, 16
    %v162 = vadd.s32 %v159, 24
    %v163 = vadd.s32 %v159, 32
    %v164 = vadd.s32 %v159, 40
    %v165 = vadd.s32 %v159, 48
    %v166 = vadd.s32 %v159, 56
    %v167 = vadd.s32 %v159, 64
    %v168 = vadd.s32 %v159, 72
    %v169 = vadd.s32 %v159, 80
    %v170 = vadd.s32 %v159, 88
    %v171 = vadd.s32 %v159, 96
    %v172 = vadd.s32 %v159, 104
    %v173 = vadd.s32 %v159, 112
    %v174 = vadd.s32 %v159, 120
    %v175 = vadd.s32 %v159, 128
    %v176 = vadd.s32 %v159, 136
    %v177 = vadd.s32 %v159, 144
    %v178 = vadd.s32 %v159, 152
    %v179 = vadd.s32 %v159, 160
    %v180 = vadd.s32 %v159, 168
    %v181 = vadd.s32 %v159, 176
    %v182 = vadd.s32 %v159, 184
    %v183 = vadd.s32 %v159, 192
    %v184 = vadd.s32 %v159, 200
    %v185 = vadd.s32 %v159, 208
    %v186 = vadd.s32 %v159, 216
    %v187 = vadd.s32 %v159, 224
    %v188 = vadd.s32 %v159, 232
    %v189 = vadd.s32 %v159, 240
    %v190 = vadd.s32 %v159, 248
    %v191 = vadd.s32 %v159, 256
    %v192 = vadd.s32 %v159, 264
    %v193 = vadd.s32 %v159, 272
    %v194 = vadd.s32 %v159, 280
    %v195 = vadd.s32 %v159, 288
    %v196 = vadd.s32 %v159, 296
    %v197 = vadd.s32 %v159, 304
    %v198 = vadd.s32 %v159, 312
    %v199 = vadd.s32 %v159, 320
    %v200 = vadd.s32 %v159, 328
    %v201 = vadd.s32 %v159, 336
    %v202 = vadd.s32 %v159, 344
    %v203 = vadd.s32 %v159, 352
    %v204 = vadd.s32 %v159, 360
    %v205 = vadd.s32 %v159, 368
    %v206 = vadd.s32 %v159, 376
    %v207 = vadd.s32 %v159, 384
    %v208 = vadd.s32 %v159, 392
    %v209 = vadd.s32 %v159, 400
    %v210 = vadd.s32 %v159, 408
    %v211 = vadd.s32 %v159, 416
    %v212 = vadd.s32 %v159, 424
    %v213 = vadd.s32 %v159, 432
    %v214 = vadd.s32 %v159, 440
    %v215 = vadd.s32 %v159, 448
    %v216 = vadd.s32 %v159, 456
    %v217 = vadd.s32 %v159, 464
    %v218 = vadd.s32 %v159, 472
    %v219 = vadd.s32 %v159, 480
    %v220 = vadd.s32 %v159, 488
    %v221 = vadd.s32 %v159, 496
    %v222 = vadd.s32 %v159, 504
    %s223 = smul.u32 0, 512
    %v224 = vstv %s223
    %v225 = vadd.s32 %v159, %v224
    %v226 = vadd.s32 %v160, %v224
    %v227 = vadd.s32 %v161, %v224
    %v228 = vadd.s32 %v162, %v224
    %v229 = vadd.s32 %v163, %v224
    %v230 = vadd.s32 %v164, %v224
    %v231 = vadd.s32 %v165, %v224
    %v232 = vadd.s32 %v166, %v224
    %v233 = vadd.s32 %v167, %v224
    %v234 = vadd.s32 %v168, %v224
    %v235 = vadd.s32 %v169, %v224
    %v236 = vadd.s32 %v170, %v224
    %v237 = vadd.s32 %v171, %v224
    %v238 = vadd.s32 %v172, %v224
    %v239 = vadd.s32 %v173, %v224
    %v240 = vadd.s32 %v174, %v224
    %v241 = vadd.s32 %v175, %v224
    %v242 = vadd.s32 %v176, %v224
    %v243 = vadd.s32 %v177, %v224
    %v244 = vadd.s32 %v178, %v224
    %v245 = vadd.s32 %v179, %v224
    %v246 = vadd.s32 %v180, %v224
    %v247 = vadd.s32 %v181, %v224
    %v248 = vadd.s32 %v182, %v224
    %v249 = vadd.s32 %v183, %v224
    %v250 = vadd.s32 %v184, %v224
    %v251 = vadd.s32 %v185, %v224
    %v252 = vadd.s32 %v186, %v224
    %v253 = vadd.s32 %v187, %v224
    %v254 = vadd.s32 %v188, %v224
    %v255 = vadd.s32 %v189, %v224
    %v256 = vadd.s32 %v190, %v224
    %v257 = vadd.s32 %v191, %v224
    %v258 = vadd.s32 %v192, %v224
    %v259 = vadd.s32 %v193, %v224
    %v260 = vadd.s32 %v194, %v224
    %v261 = vadd.s32 %v195, %v224
    %v262 = vadd.s32 %v196, %v224
    %v263 = vadd.s32 %v197, %v224
    %v264 = vadd.s32 %v198, %v224
    %v265 = vadd.s32 %v199, %v224
    %v266 = vadd.s32 %v200, %v224
    %v267 = vadd.s32 %v201, %v224
    %v268 = vadd.s32 %v202, %v224
    %v269 = vadd.s32 %v203, %v224
    %v270 = vadd.s32 %v204, %v224
    %v271 = vadd.s32 %v205, %v224
    %v272 = vadd.s32 %v206, %v224
    %v273 = vadd.s32 %v207, %v224
    %v274 = vadd.s32 %v208, %v224
    %v275 = vadd.s32 %v209, %v224
    %v276 = vadd.s32 %v210, %v224
    %v277 = vadd.s32 %v211, %v224
    %v278 = vadd.s32 %v212, %v224
    %v279 = vadd.s32 %v213, %v224
    %v280 = vadd.s32 %v214, %v224
    %v281 = vadd.s32 %v215, %v224
    %v282 = vadd.s32 %v216, %v224
    %v283 = vadd.s32 %v217, %v224
    %v284 = vadd.s32 %v218, %v224
    %v285 = vadd.s32 %v219, %v224
    %v286 = vadd.s32 %v220, %v224
    %v287 = vadd.s32 %v221, %v224
    %v288 = vadd.s32 %v222, %v224
    %vm289 = vcmp.lt.s32.totalorder %v225, 512
    %vm290 = vcmp.lt.s32.totalorder %v226, 512
    %vm291 = vcmp.lt.s32.totalorder %v227, 512
    %vm292 = vcmp.lt.s32.totalorder %v228, 512
    %vm293 = vcmp.lt.s32.totalorder %v229, 512
    %vm294 = vcmp.lt.s32.totalorder %v230, 512
    %vm295 = vcmp.lt.s32.totalorder %v231, 512
    %vm296 = vcmp.lt.s32.totalorder %v232, 512
    %vm297 = vcmp.lt.s32.totalorder %v233, 512
    %vm298 = vcmp.lt.s32.totalorder %v234, 512
    %vm299 = vcmp.lt.s32.totalorder %v235, 512
    %vm300 = vcmp.lt.s32.totalorder %v236, 512
    %vm301 = vcmp.lt.s32.totalorder %v237, 512
    %vm302 = vcmp.lt.s32.totalorder %v238, 512
    %vm303 = vcmp.lt.s32.totalorder %v239, 512
    %vm304 = vcmp.lt.s32.totalorder %v240, 512
    %vm305 = vcmp.lt.s32.totalorder %v241, 512
    %vm306 = vcmp.lt.s32.totalorder %v242, 512
    %vm307 = vcmp.lt.s32.totalorder %v243, 512
    %vm308 = vcmp.lt.s32.totalorder %v244, 512
    %vm309 = vcmp.lt.s32.totalorder %v245, 512
    %vm310 = vcmp.lt.s32.totalorder %v246, 512
    %vm311 = vcmp.lt.s32.totalorder %v247, 512
    %vm312 = vcmp.lt.s32.totalorder %v248, 512
    %vm313 = vcmp.lt.s32.totalorder %v249, 512
    %vm314 = vcmp.lt.s32.totalorder %v250, 512
    %vm315 = vcmp.lt.s32.totalorder %v251, 512
    %vm316 = vcmp.lt.s32.totalorder %v252, 512
    %vm317 = vcmp.lt.s32.totalorder %v253, 512
    %vm318 = vcmp.lt.s32.totalorder %v254, 512
    %vm319 = vcmp.lt.s32.totalorder %v255, 512
    %vm320 = vcmp.lt.s32.totalorder %v256, 512
    %vm321 = vcmp.lt.s32.totalorder %v257, 512
    %vm322 = vcmp.lt.s32.totalorder %v258, 512
    %vm323 = vcmp.lt.s32.totalorder %v259, 512
    %vm324 = vcmp.lt.s32.totalorder %v260, 512
    %vm325 = vcmp.lt.s32.totalorder %v261, 512
    %vm326 = vcmp.lt.s32.totalorder %v262, 512
    %vm327 = vcmp.lt.s32.totalorder %v263, 512
    %vm328 = vcmp.lt.s32.totalorder %v264, 512
    %vm329 = vcmp.lt.s32.totalorder %v265, 512
    %vm330 = vcmp.lt.s32.totalorder %v266, 512
    %vm331 = vcmp.lt.s32.totalorder %v267, 512
    %vm332 = vcmp.lt.s32.totalorder %v268, 512
    %vm333 = vcmp.lt.s32.totalorder %v269, 512
    %vm334 = vcmp.lt.s32.totalorder %v270, 512
    %vm335 = vcmp.lt.s32.totalorder %v271, 512
    %vm336 = vcmp.lt.s32.totalorder %v272, 512
    %vm337 = vcmp.lt.s32.totalorder %v273, 512
    %vm338 = vcmp.lt.s32.totalorder %v274, 512
    %vm339 = vcmp.lt.s32.totalorder %v275, 512
    %vm340 = vcmp.lt.s32.totalorder %v276, 512
    %vm341 = vcmp.lt.s32.totalorder %v277, 512
    %vm342 = vcmp.lt.s32.totalorder %v278, 512
    %vm343 = vcmp.lt.s32.totalorder %v279, 512
    %vm344 = vcmp.lt.s32.totalorder %v280, 512
    %vm345 = vcmp.lt.s32.totalorder %v281, 512
    %vm346 = vcmp.lt.s32.totalorder %v282, 512
    %vm347 = vcmp.lt.s32.totalorder %v283, 512
    %vm348 = vcmp.lt.s32.totalorder %v284, 512
    %vm349 = vcmp.lt.s32.totalorder %v285, 512
    %vm350 = vcmp.lt.s32.totalorder %v286, 512
    %vm351 = vcmp.lt.s32.totalorder %v287, 512
    %vm352 = vcmp.lt.s32.totalorder %v288, 512
    %v353 = vsel %vm289, %v94, 0.0
    %v354 = vsel %vm290, %v95, 0.0
    %v355 = vsel %vm291, %v96, 0.0
    %v356 = vsel %vm292, %v97, 0.0
    %v357 = vsel %vm293, %v98, 0.0
    %v358 = vsel %vm294, %v99, 0.0
    %v359 = vsel %vm295, %v100, 0.0
    %v360 = vsel %vm296, %v101, 0.0
    %v361 = vsel %vm297, %v102, 0.0
    %v362 = vsel %vm298, %v103, 0.0
    %v363 = vsel %vm299, %v104, 0.0
    %v364 = vsel %vm300, %v105, 0.0
    %v365 = vsel %vm301, %v106, 0.0
    %v366 = vsel %vm302, %v107, 0.0
    %v367 = vsel %vm303, %v108, 0.0
    %v368 = vsel %vm304, %v109, 0.0
    %v369 = vsel %vm305, %v110, 0.0
    %v370 = vsel %vm306, %v111, 0.0
    %v371 = vsel %vm307, %v112, 0.0
    %v372 = vsel %vm308, %v113, 0.0
    %v373 = vsel %vm309, %v114, 0.0
    %v374 = vsel %vm310, %v115, 0.0
    %v375 = vsel %vm311, %v116, 0.0
    %v376 = vsel %vm312, %v117, 0.0
    %v377 = vsel %vm313, %v118, 0.0
    %v378 = vsel %vm314, %v119, 0.0
    %v379 = vsel %vm315, %v120, 0.0
    %v380 = vsel %vm316, %v121, 0.0
    %v381 = vsel %vm317, %v122, 0.0
    %v382 = vsel %vm318, %v123, 0.0
    %v383 = vsel %vm319, %v124, 0.0
    %v384 = vsel %vm320, %v125, 0.0
    %v385 = vsel %vm321, %v126, 0.0
    %v386 = vsel %vm322, %v127, 0.0
    %v387 = vsel %vm323, %v128, 0.0
    %v388 = vsel %vm324, %v129, 0.0
    %v389 = vsel %vm325, %v130, 0.0
    %v390 = vsel %vm326, %v131, 0.0
    %v391 = vsel %vm327, %v132, 0.0
    %v392 = vsel %vm328, %v133, 0.0
    %v393 = vsel %vm329, %v134, 0.0
    %v394 = vsel %vm330, %v135, 0.0
    %v395 = vsel %vm331, %v136, 0.0
    %v396 = vsel %vm332, %v137, 0.0
    %v397 = vsel %vm333, %v138, 0.0
    %v398 = vsel %vm334, %v139, 0.0
    %v399 = vsel %vm335, %v140, 0.0
    %v400 = vsel %vm336, %v141, 0.0
    %v401 = vsel %vm337, %v142, 0.0
    %v402 = vsel %vm338, %v143, 0.0
    %v403 = vsel %vm339, %v144, 0.0
    %v404 = vsel %vm340, %v145, 0.0
    %v405 = vsel %vm341, %v146, 0.0
    %v406 = vsel %vm342, %v147, 0.0
    %v407 = vsel %vm343, %v148, 0.0
    %v408 = vsel %vm344, %v149, 0.0
    %v409 = vsel %vm345, %v150, 0.0
    %v410 = vsel %vm346, %v151, 0.0
    %v411 = vsel %vm347, %v152, 0.0
    %v412 = vsel %vm348, %v153, 0.0
    %v413 = vsel %vm349, %v154, 0.0
    %v414 = vsel %vm350, %v155, 0.0
    %v415 = vsel %vm351, %v156, 0.0
    %v416 = vsel %vm352, %v157, 0.0
    %v417 = vadd.f32 %v353, %v354
    %v418 = vadd.f32 %v417, %v355
    %v419 = vadd.f32 %v418, %v356
    %v420 = vadd.f32 %v419, %v357
    %v421 = vadd.f32 %v420, %v358
    %v422 = vadd.f32 %v421, %v359
    %v423 = vadd.f32 %v422, %v360
    %v424 = vadd.f32 %v423, %v361
    %v425 = vadd.f32 %v424, %v362
    %v426 = vadd.f32 %v425, %v363
    %v427 = vadd.f32 %v426, %v364
    %v428 = vadd.f32 %v427, %v365
    %v429 = vadd.f32 %v428, %v366
    %v430 = vadd.f32 %v429, %v367
    %v431 = vadd.f32 %v430, %v368
    %v432 = vadd.f32 %v431, %v369
    %v433 = vadd.f32 %v432, %v370
    %v434 = vadd.f32 %v433, %v371
    %v435 = vadd.f32 %v434, %v372
    %v436 = vadd.f32 %v435, %v373
    %v437 = vadd.f32 %v436, %v374
    %v438 = vadd.f32 %v437, %v375
    %v439 = vadd.f32 %v438, %v376
    %v440 = vadd.f32 %v439, %v377
    %v441 = vadd.f32 %v440, %v378
    %v442 = vadd.f32 %v441, %v379
    %v443 = vadd.f32 %v442, %v380
    %v444 = vadd.f32 %v443, %v381
    %v445 = vadd.f32 %v444, %v382
    %v446 = vadd.f32 %v445, %v383
    %v447 = vadd.f32 %v446, %v384
    %v448 = vadd.f32 %v447, %v385
    %v449 = vadd.f32 %v448, %v386
    %v450 = vadd.f32 %v449, %v387
    %v451 = vadd.f32 %v450, %v388
    %v452 = vadd.f32 %v451, %v389
    %v453 = vadd.f32 %v452, %v390
    %v454 = vadd.f32 %v453, %v391
    %v455 = vadd.f32 %v454, %v392
    %v456 = vadd.f32 %v455, %v393
    %v457 = vadd.f32 %v456, %v394
    %v458 = vadd.f32 %v457, %v395
    %v459 = vadd.f32 %v458, %v396
    %v460 = vadd.f32 %v459, %v397
    %v461 = vadd.f32 %v460, %v398
    %v462 = vadd.f32 %v461, %v399
    %v463 = vadd.f32 %v462, %v400
    %v464 = vadd.f32 %v463, %v401
    %v465 = vadd.f32 %v464, %v402
    %v466 = vadd.f32 %v465, %v403
    %v467 = vadd.f32 %v466, %v404
    %v468 = vadd.f32 %v467, %v405
    %v469 = vadd.f32 %v468, %v406
    %v470 = vadd.f32 %v469, %v407
    %v471 = vadd.f32 %v470, %v408
    %v472 = vadd.f32 %v471, %v409
    %v473 = vadd.f32 %v472, %v410
    %v474 = vadd.f32 %v473, %v411
    %v475 = vadd.f32 %v474, %v412
    %v476 = vadd.f32 %v475, %v413
    %v477 = vadd.f32 %v476, %v414
    %v478 = vadd.f32 %v477, %v415
    %v479 = vadd.f32 %v478, %v416
    %v480 = vrot.slane %v479, 4
    %v481 = vadd.f32 %v479, %v480
    %v482 = vrot.slane %v481, 2
    %v483 = vadd.f32 %v481, %v482
    %v484 = vrot.slane %v483, 1
    %v485 = vadd.f32 %v483, %v484
    %v486 = vmul.f32 %v353, %v353
    %v487 = vmul.f32 %v354, %v354
    %v488 = vmul.f32 %v355, %v355
    %v489 = vmul.f32 %v356, %v356
    %v490 = vmul.f32 %v357, %v357
    %v491 = vmul.f32 %v358, %v358
    %v492 = vmul.f32 %v359, %v359
    %v493 = vmul.f32 %v360, %v360
    %v494 = vmul.f32 %v361, %v361
    %v495 = vmul.f32 %v362, %v362
    %v496 = vmul.f32 %v363, %v363
    %v497 = vmul.f32 %v364, %v364
    %v498 = vmul.f32 %v365, %v365
    %v499 = vmul.f32 %v366, %v366
    %v500 = vmul.f32 %v367, %v367
    %v501 = vmul.f32 %v368, %v368
    %v502 = vmul.f32 %v369, %v369
    %v503 = vmul.f32 %v370, %v370
    %v504 = vmul.f32 %v371, %v371
    %v505 = vmul.f32 %v372, %v372
    %v506 = vmul.f32 %v373, %v373
    %v507 = vmul.f32 %v374, %v374
    %v508 = vmul.f32 %v375, %v375
    %v509 = vmul.f32 %v376, %v376
    %v510 = vmul.f32 %v377, %v377
    %v511 = vmul.f32 %v378, %v378
    %v512 = vmul.f32 %v379, %v379
    %v513 = vmul.f32 %v380, %v380
    %v514 = vmul.f32 %v381, %v381
    %v515 = vmul.f32 %v382, %v382
    %v516 = vmul.f32 %v383, %v383
    %v517 = vmul.f32 %v384, %v384
    %v518 = vmul.f32 %v385, %v385
    %v519 = vmul.f32 %v386, %v386
    %v520 = vmul.f32 %v387, %v387
    %v521 = vmul.f32 %v388, %v388
    %v522 = vmul.f32 %v389, %v389
    %v523 = vmul.f32 %v390, %v390
    %v524 = vmul.f32 %v391, %v391
    %v525 = vmul.f32 %v392, %v392
    %v526 = vmul.f32 %v393, %v393
    %v527 = vmul.f32 %v394, %v394
    %v528 = vmul.f32 %v395, %v395
    %v529 = vmul.f32 %v396, %v396
    %v530 = vmul.f32 %v397, %v397
    %v531 = vmul.f32 %v398, %v398
    %v532 = vmul.f32 %v399, %v399
    %v533 = vmul.f32 %v400, %v400
    %v534 = vmul.f32 %v401, %v401
    %v535 = vmul.f32 %v402, %v402
    %v536 = vmul.f32 %v403, %v403
    %v537 = vmul.f32 %v404, %v404
    %v538 = vmul.f32 %v405, %v405
    %v539 = vmul.f32 %v406, %v406
    %v540 = vmul.f32 %v407, %v407
    %v541 = vmul.f32 %v408, %v408
    %v542 = vmul.f32 %v409, %v409
    %v543 = vmul.f32 %v410, %v410
    %v544 = vmul.f32 %v411, %v411
    %v545 = vmul.f32 %v412, %v412
    %v546 = vmul.f32 %v413, %v413
    %v547 = vmul.f32 %v414, %v414
    %v548 = vmul.f32 %v415, %v415
    %v549 = vmul.f32 %v416, %v416
    %v550 = vadd.f32 %v486, %v487
    %v551 = vadd.f32 %v550, %v488
    %v552 = vadd.f32 %v551, %v489
    %v553 = vadd.f32 %v552, %v490
    %v554 = vadd.f32 %v553, %v491
    %v555 = vadd.f32 %v554, %v492
    %v556 = vadd.f32 %v555, %v493
    %v557 = vadd.f32 %v556, %v494
    %v558 = vadd.f32 %v557, %v495
    %v559 = vadd.f32 %v558, %v496
    %v560 = vadd.f32 %v559, %v497
    %v561 = vadd.f32 %v560, %v498
    %v562 = vadd.f32 %v561, %v499
    %v563 = vadd.f32 %v562, %v500
    %v564 = vadd.f32 %v563, %v501
    %v565 = vadd.f32 %v564, %v502
    %v566 = vadd.f32 %v565, %v503
    %v567 = vadd.f32 %v566, %v504
    %v568 = vadd.f32 %v567, %v505
    %v569 = vadd.f32 %v568, %v506
    %v570 = vadd.f32 %v569, %v507
    %v571 = vadd.f32 %v570, %v508
    %v572 = vadd.f32 %v571, %v509
    %v573 = vadd.f32 %v572, %v510
    %v574 = vadd.f32 %v573, %v511
    %v575 = vadd.f32 %v574, %v512
    %v576 = vadd.f32 %v575, %v513
    %v577 = vadd.f32 %v576, %v514
    %v578 = vadd.f32 %v577, %v515
    %v579 = vadd.f32 %v578, %v516
    %v580 = vadd.f32 %v579, %v517
    %v581 = vadd.f32 %v580, %v518
    %v582 = vadd.f32 %v581, %v519
    %v583 = vadd.f32 %v582, %v520
    %v584 = vadd.f32 %v583, %v521
    %v585 = vadd.f32 %v584, %v522
    %v586 = vadd.f32 %v585, %v523
    %v587 = vadd.f32 %v586, %v524
    %v588 = vadd.f32 %v587, %v525
    %v589 = vadd.f32 %v588, %v526
    %v590 = vadd.f32 %v589, %v527
    %v591 = vadd.f32 %v590, %v528
    %v592 = vadd.f32 %v591, %v529
    %v593 = vadd.f32 %v592, %v530
    %v594 = vadd.f32 %v593, %v531
    %v595 = vadd.f32 %v594, %v532
    %v596 = vadd.f32 %v595, %v533
    %v597 = vadd.f32 %v596, %v534
    %v598 = vadd.f32 %v597, %v535
    %v599 = vadd.f32 %v598, %v536
    %v600 = vadd.f32 %v599, %v537
    %v601 = vadd.f32 %v600, %v538
    %v602 = vadd.f32 %v601, %v539
    %v603 = vadd.f32 %v602, %v540
    %v604 = vadd.f32 %v603, %v541
    %v605 = vadd.f32 %v604, %v542
    %v606 = vadd.f32 %v605, %v543
    %v607 = vadd.f32 %v606, %v544
    %v608 = vadd.f32 %v607, %v545
    %v609 = vadd.f32 %v608, %v546
    %v610 = vadd.f32 %v609, %v547
    %v611 = vadd.f32 %v610, %v548
    %v612 = vadd.f32 %v611, %v549
    %v613 = vrot.slane %v612, 4
    %v614 = vadd.f32 %v612, %v613
    %v615 = vrot.slane %v614, 2
    %v616 = vadd.f32 %v614, %v615
    %v617 = vrot.slane %v616, 1
    %v618 = vadd.f32 %v616, %v617
    %v619 = vld [vmem:[#allocation5] sm:$0x3]
    %vm620 = vcmask 1040384
    %v621 = vsel %vm620, %v485, %v618
    %v622 = vadd.f32 %v619, %v621
    %623 = vst [vmem:[#allocation5] sm:$0x3] %v622
    // Predicated region
    $region14: #{tpu_custom_call.1} parent=1 // pred_check
      _
    $region15: #{tpu_custom_call.1} parent=1 // pred_check_branch
      %625 = sbr.rel (0) target = $region17
    $region16: #{tpu_custom_call.1} parent=1 // pred_region
      %627 = vsyncadd [#allocation4], 0
      %s629 = sshll.u32 [#allocation5], 4
      %s630 = int_to_ptr.vmem [resolvable:$true] %s629
      %s631 = sshll.u32 %s1, 4
      %s632 = int_to_ptr.hbm [resolvable:$true] %s631
      %634 = dma.vmem_to_hbm [thread:$0]  %s630, 32, %s632, [#allocation4]
    $region17: #{tpu_custom_call.1} parent=1 // pred_fallthru
      _
    // Predicated region
    $region18: #{tpu_custom_call.1} parent=1 // pred_check
      _
    $region19: #{tpu_custom_call.1} parent=1 // pred_check_branch
      %636 = sbr.rel (0) target = $region21
    $region20: #{tpu_custom_call.1} parent=1 // pred_region
      %638 = dma.done [#allocation4], 32
    $region21: #{tpu_custom_call.1} parent=1 // pred_fallthru
      _
    %639 = vsyncpa [#allocation3], 1
    %640 = vsyncpa [#allocation4], 1

</llo_original>
